<compile_context>
chip_gen: v6e
topology: v6e:2x2x1
jax: 0.10.0
libtpu: 0.0.40
codegen_flags: <defaults>
</compile_context>

<pallas_src>
import numpy as np
import jax
import jax.numpy as jnp
from jax.experimental import pallas as pl
from jax.experimental.pallas import tpu as pltpu


# ----------------------------------------------------------------------------
# Kernel: fused affine map over a dense (block_rows, 128) batch tile.
#   wb_ref : SMEM (4,) f32            -> [w0, w1, w2, b]
#   x_ref  : VMEM (3, block_rows, 128) f32   (3 feature planes, batch dense)
#   o_ref  : VMEM (block_rows, 128) f32
# ----------------------------------------------------------------------------
def _affine_kernel(wb_ref, x_ref, o_ref):
    x = x_ref[...]                                   # (3, br, 128)
    y = (wb_ref[0] * x[0]
         + wb_ref[1] * x[1]
         + wb_ref[2] * x[2]
         + wb_ref[3])                                # (br, 128), pure VPU FMAs
    o_ref[...] = y.astype(o_ref.dtype)


# ----------------------------------------------------------------------------
# Parameter fusion (done once, on the host, in float64 for tight agreement).
# PyTorch-style params: w* are (out, in), b* are (out,).
#   W_combined = W1^T @ W2^T @ W3^T @ W4^T            -> (3, 1)
#   b_combined = ((b1 W2^T + b2) W3^T + b3) W4^T + b4 -> (1,)
# ----------------------------------------------------------------------------
def fuse_params(params):
    w1 = np.asarray(params["w1"], dtype=np.float64)
    w2 = np.asarray(params["w2"], dtype=np.float64)
    w3 = np.asarray(params["w3"], dtype=np.float64)
    w4 = np.asarray(params["w4"], dtype=np.float64)
    b1 = np.asarray(params["b1"], dtype=np.float64)
    b2 = np.asarray(params["b2"], dtype=np.float64)
    b3 = np.asarray(params["b3"], dtype=np.float64)
    b4 = np.asarray(params["b4"], dtype=np.float64)
    w = w1.T @ w2.T @ w3.T @ w4.T                                   # (3, 1)
    b = ((b1 @ w2.T + b2) @ w3.T + b3) @ w4.T + b4                  # (1,)
    fused = np.concatenate([w.reshape(-1), b.reshape(-1)])          # (4,)
    return jnp.asarray(fused, dtype=jnp.float32)


# ----------------------------------------------------------------------------
# Generation-aware tile selection.
#   Double-buffered bytes per block-row = 2 copies * (3 in + 1 out) planes
#                                          * 4 B * 128 lanes = 4096 B.
#   Budget ~VMEM/4 -> block_rows ~8192 on 128 MiB (v5e/v6e), ~4096 on 64 MiB (v7x).
# ----------------------------------------------------------------------------
_BYTES_PER_BLOCK_ROW = 2 * (3 + 1) * 4 * 128    # double-buffered in+out


def _round_up(n, m):
    return ((n + m - 1) // m) * m


def _pick_block_rows():
    try:
        vmem = int(pltpu.get_tpu_info().vmem_capacity_bytes)
    except Exception:
        vmem = 64 << 20                          # conservative (v7x-sized) fallback
    budget = vmem // 4                           # leave headroom for scratch/overheads
    br = (budget // _BYTES_PER_BLOCK_ROW) // 8 * 8
    return max(8, min(8192, br))


# ----------------------------------------------------------------------------
# Hot-path forward: planar input (3, R, 128) f32 -> dense output (R, 128) f32.
# This is the layout producers should feed directly (no transpose/pad pass).
# ----------------------------------------------------------------------------
def net_forward_planar(x_planar, fused, *, block_rows=None):
    D, R, L = x_planar.shape
    assert D == 3 and L == 128

    if block_rows is None:
        block_rows = _pick_block_rows()
    br = min(block_rows, _round_up(R, 8))
    # Prefer >= 2 grid steps when there is enough work so v7x's two TensorCores
    # both get a share of the (parallel) batch axis.
    if pl.cdiv(R, br) == 1 and R >= 16:
        br = _round_up(pl.cdiv(R, 2), 8)

    grid = (pl.cdiv(R, br),)
    n_elems = R * 128
    vmem_needed = _BYTES_PER_BLOCK_ROW * br

    return pl.pallas_call(
        _affine_kernel,
        out_shape=jax.ShapeDtypeStruct((R, 128), jnp.float32),
        grid_spec=pltpu.PrefetchScalarGridSpec(
            num_scalar_prefetch=0,
            grid=grid,
            in_specs=[
                # 4 fused scalars live in SMEM: no VMEM DMA / double buffering.
                pl.BlockSpec(memory_space=pltpu.MemorySpace.SMEM),
                # Dense batch tile: 3 feature planes x (br, 128) rows/lanes.
                pl.BlockSpec((3, br, 128), lambda i: (0, i, 0)),
            ],
            out_specs=pl.BlockSpec((br, 128), lambda i: (i, 0)),
        ),
        compiler_params=pltpu.CompilerParams(
            dimension_semantics=("parallel",),     # batch axis shards across TCs
            vmem_limit_bytes=vmem_needed + (8 << 20),
        ),
        cost_estimate=pl.CostEstimate(
            flops=6 * n_elems, transcendentals=0, bytes_accessed=16 * n_elems),
    )(fused, x_planar)


# ----------------------------------------------------------------------------
# Compatibility wrapper for the module's (N, 3) -> (N, 1) contract.
# The (N,3) -> (3,R,128) conversion is one extra HBM pass; producers that can
# emit the planar layout should call `net_forward_planar` directly.
# ----------------------------------------------------------------------------
def to_planar(x):
    N, D_in = x.shape
    assert D_in == 3
    R = _round_up(N, 128) // 128
    xt = x.T                                       # (3, N)
    if R * 128 != N:
        xt = jnp.pad(xt, ((0, 0), (0, R * 128 - N)))
    return xt.reshape(3, R, 128)


def net_forward(x, fused, *, block_rows=None):
    N = x.shape[0]
    out = net_forward_planar(to_planar(x), fused, block_rows=block_rows)
    # Padded tail columns hold garbage affine values; the [:N] slice drops them.
    return out.reshape(-1)[:N].reshape(N, 1)


# ----------------------------------------------------------------------------
# Deterministic init mimicking torch.nn.Linear default (U(-1/sqrt(fan_in), +)).
# ----------------------------------------------------------------------------
def init_params(key):
    layer_dims = [(3, 6), (6, 12), (12, 24), (24, 1)]
    params = {}
    keys = jax.random.split(key, 2 * len(layer_dims))
    for idx, (fan_in, fan_out) in enumerate(layer_dims):
        bound = 1.0 / jnp.sqrt(float(fan_in))
        w = jax.random.uniform(keys[2 * idx], (fan_out, fan_in),
                               minval=-bound, maxval=bound, dtype=jnp.float32)
        b = jax.random.uniform(keys[2 * idx + 1], (fan_out,),
                               minval=-bound, maxval=bound, dtype=jnp.float32)
        params[f"w{idx + 1}"] = w
        params[f"b{idx + 1}"] = b
    return params


def reference_forward(x, params):
    h = x @ params["w1"].T + params["b1"]
    h = h @ params["w2"].T + params["b2"]
    h = h @ params["w3"].T + params["b3"]
    return h @ params["w4"].T + params["b4"]


if __name__ == "__main__":
    key = jax.random.PRNGKey(0)
    k_param, k_x = jax.random.split(key)

    params = init_params(k_param)
    fused = jax.block_until_ready(fuse_params(params))   # folded once at load time

    # Small demo batch; deliberately NOT a multiple of 128 to exercise the
    # ragged-tail handling of the compatibility wrapper.
    N = 1000
    x = jax.random.uniform(k_x, (N, 3), dtype=jnp.float32)

    forward = jax.jit(net_forward)
    out = jax.block_until_ready(forward(x, fused))

    ref = reference_forward(x, params)
    assert out.shape == (N, 1)
    max_err = jnp.max(jnp.abs(out - ref))
    assert jnp.allclose(out, ref, atol=1e-4, rtol=1e-4), \
        f"mismatch vs pure-JAX reference (max abs err = {max_err})"

    print("KERNEL_OK")
</pallas_src>

<mosaic_0001>
module attributes {stable_mosaic.version = 11 : i64} {
  func.func @_affine_kernel(%arg0: i32, %arg1: memref<4xf32, #tpu.memory_space<smem>>, %arg2: memref<3x8x128xf32, #tpu.memory_space<vmem>>, %arg3: memref<8x128xf32, #tpu.memory_space<vmem>>) attributes {dimension_semantics = [#tpu.dimension_semantics<parallel>], iteration_bounds = array<i64: 1>, scalar_prefetch = 0 : i64, scratch_operands = 0 : i64, tpu.core_type = #tpu.core_type<tc>, window_params = [{transform_indices = @transform_0, window_bounds = array<i64: 4>}, {transform_indices = @transform_1, window_bounds = array<i64: 3, 8, 128>}, {transform_indices = @transform_2, window_bounds = array<i64: 8, 128>}]} {
    %c0 = arith.constant 0 : index
    %c0_0 = arith.constant 0 : index
    %c0_1 = arith.constant 0 : index
    %0 = vector.load %arg2[%c0, %c0_0, %c0_1] : memref<3x8x128xf32, #tpu.memory_space<vmem>>, vector<3x8x128xf32>
    %c0_2 = arith.constant 0 : index
    %1 = memref.load %arg1[%c0_2] : memref<4xf32, #tpu.memory_space<smem>>
    %2 = vector.extract_strided_slice %0 {offsets = [0, 0, 0], sizes = [1, 8, 128], strides = [1, 1, 1]} : vector<3x8x128xf32> to vector<1x8x128xf32>
    %3 = vector.shape_cast %2 : vector<1x8x128xf32> to vector<8x128xf32>
    %4 = vector.broadcast %1 : f32 to vector<8x128xf32>
    %5 = arith.mulf %4, %3 : vector<8x128xf32>
    %c1 = arith.constant 1 : index
    %6 = memref.load %arg1[%c1] : memref<4xf32, #tpu.memory_space<smem>>
    %7 = vector.extract_strided_slice %0 {offsets = [1, 0, 0], sizes = [1, 8, 128], strides = [1, 1, 1]} : vector<3x8x128xf32> to vector<1x8x128xf32>
    %8 = vector.shape_cast %7 : vector<1x8x128xf32> to vector<8x128xf32>
    %9 = vector.broadcast %6 : f32 to vector<8x128xf32>
    %10 = arith.mulf %9, %8 : vector<8x128xf32>
    %11 = arith.addf %5, %10 : vector<8x128xf32>
    %c2 = arith.constant 2 : index
    %12 = memref.load %arg1[%c2] : memref<4xf32, #tpu.memory_space<smem>>
    %13 = vector.extract_strided_slice %0 {offsets = [2, 0, 0], sizes = [1, 8, 128], strides = [1, 1, 1]} : vector<3x8x128xf32> to vector<1x8x128xf32>
    %14 = vector.shape_cast %13 : vector<1x8x128xf32> to vector<8x128xf32>
    %15 = vector.broadcast %12 : f32 to vector<8x128xf32>
    %16 = arith.mulf %15, %14 : vector<8x128xf32>
    %17 = arith.addf %11, %16 : vector<8x128xf32>
    %c3 = arith.constant 3 : index
    %18 = memref.load %arg1[%c3] : memref<4xf32, #tpu.memory_space<smem>>
    %19 = vector.broadcast %18 : f32 to vector<8x128xf32>
    %20 = arith.addf %17, %19 : vector<8x128xf32>
    %c0_3 = arith.constant 0 : index
    %c0_4 = arith.constant 0 : index
    %21 = vector.load %arg3[%c0_3, %c0_4] : memref<8x128xf32, #tpu.memory_space<vmem>>, vector<8x128xf32>
    tpu.vector_store %arg3[%c0_3, %c0_4], %20 {strides = array<i32>} : memref<8x128xf32, #tpu.memory_space<vmem>>, vector<8x128xf32>,
    return
  }
  func.func @transform_0(%arg0: i32) -> i32 {
    %c0_i32 = arith.constant 0 : i32
    %c0_i32_0 = arith.constant 0 : i32
    return %c0_i32 : i32
  }
  func.func @transform_1(%arg0: i32) -> (i32, i32, i32) {
    %c0_i32 = arith.constant 0 : i32
    %c0_i32_0 = arith.constant 0 : i32
    %c0_i32_1 = arith.constant 0 : i32
    return %c0_i32, %arg0, %c0_i32_0 : i32, i32, i32
  }
  func.func @transform_2(%arg0: i32) -> (i32, i32) {
    %c0_i32 = arith.constant 0 : i32
    %c0_i32_0 = arith.constant 0 : i32
    return %arg0, %c0_i32 : i32, i32
  }
}

</mosaic_0001>

<llo_original>
// kernel: net_forward.1
$region0: #{net_forward.1}
  #allocation0 [shape = 'u32[]', space=smem, size = 0x4, offset = 0x4, fixed_abs, tag = 'smem constant byte address 0x4 - core index']
  #allocation1 [shape = 'u32[144,128]{1,0:T(1,128)}', space=vmem, size = 0x12000, scoped, tag = 'internal scratch']
  %s0 = inlined_call_operand.vmem [shape: f32[4], index: 0, kind: input, shape index: {}]
  %s1 = inlined_call_operand.vmem [shape: f32[3,8,128], index: 1, kind: input, shape index: {}]
  %s2 = inlined_call_operand.hbm [shape: f32[8,128], index: 2, kind: output, shape index: {}]
  %s3 = sld [smem:[#allocation0]]
  $region22: #{net_forward.1} parent=0
    _
  %s5 = ssub.s32 1, %s3
  %s6 = scalar_select 0, %s5, %s3
  $region1: #{net_forward.1} parent=0
    #allocation2 [shape = 'u8[512]{0}', space=smem, size = 0x200, scoped, tag = 'input window, operand 0, single buffered']
    #allocation3 [shape = 's32[1]{0}', space=sflag, size = 0x4, scoped, tag = 'scoped memory for net_forward.1']
    #allocation4 [shape = 's32[1]{0}', space=sflag, size = 0x4, scoped, tag = 'scoped memory for net_forward.1']
    #allocation5 [shape = 'u8[4096]{0}', space=vmem, size = 0x1000, scoped, tag = 'output window, operand 0, single buffered']
    %7 = vsyncpa [#allocation4], 0
    %8 = vsyncpa [#allocation3], 0
    // Predicated region
    $region2: #{net_forward.1} parent=1 // pred_check
      _
    $region3: #{net_forward.1} parent=1 // pred_check_branch
      %10 = sbr.rel (0) target = $region5
    $region4: #{net_forward.1} parent=1 // pred_region
      %s12 = ssub.s32 16, 16
      %13 = vsyncadd [#allocation4], %s12
      %s15 = sshll.u32 %s0, 4
      %s16 = int_to_ptr.vmem [resolvable:$true] %s15
      %18 = dma.vmem_to_smem %s16, 16, [#allocation2], [#allocation4]
    $region5: #{net_forward.1} parent=1 // pred_fallthru
      _
    // Predicated region
    $region6: #{net_forward.1} parent=1 // pred_check
      _
    $region7: #{net_forward.1} parent=1 // pred_check_branch
      %20 = sbr.rel (0) target = $region9
    $region8: #{net_forward.1} parent=1 // pred_region
      _
    $region9: #{net_forward.1} parent=1 // pred_fallthru
      _
    // Predicated region
    $region10: #{net_forward.1} parent=1 // pred_check
      _
    $region11: #{net_forward.1} parent=1 // pred_check_branch
      %22 = sbr.rel (0) target = $region13
    $region12: #{net_forward.1} parent=1 // pred_region
      %23 = dma.done [#allocation4], 16
    $region13: #{net_forward.1} parent=1 // pred_fallthru
      _
    %24 = sfence
    %v25 = vld [vmem:[%s1] sm:$0xff]
    %v26 = vld [vmem:[%s1 + $0x8] sm:$0xff]
    %v27 = vld [vmem:[%s1 + $0x10] sm:$0xff]
    %s28 = sld [smem:[#allocation2]]
    %v29 = vstv %s28
    %v30 = vmul.f32 %v29, %v25
    %s31 = sld [smem:[#allocation2 + $0x1]]
    %v32 = vstv %s31
    %v33 = vmul.f32 %v32, %v26
    %v34 = vadd.f32 %v30, %v33
    %s35 = sld [smem:[#allocation2 + $0x2]]
    %v36 = vstv %s35
    %v37 = vmul.f32 %v36, %v27
    %v38 = vadd.f32 %v34, %v37
    %s39 = sld [smem:[#allocation2 + $0x3]]
    %v40 = vstv %s39
    %v41 = vadd.f32 %v38, %v40
    %42 = vst [vmem:[#allocation5] sm:$0xff] %v41
    // Predicated region
    $region14: #{net_forward.1} parent=1 // pred_check
      _
    $region15: #{net_forward.1} parent=1 // pred_check_branch
      %44 = sbr.rel (0) target = $region17
    $region16: #{net_forward.1} parent=1 // pred_region
      %s46 = ssub.s32 128, 128
      %47 = vsyncadd [#allocation3], %s46
      %s49 = sshll.u32 [#allocation5], 4
      %s50 = int_to_ptr.vmem [resolvable:$true] %s49
      %52 = dma.vmem_to_hbm [thread:$0]  %s50, 128, %s2, [#allocation3]
    $region17: #{net_forward.1} parent=1 // pred_fallthru
      _
    // Predicated region
    $region18: #{net_forward.1} parent=1 // pred_check
      _
    $region19: #{net_forward.1} parent=1 // pred_check_branch
      %54 = sbr.rel (0) target = $region21
    $region20: #{net_forward.1} parent=1 // pred_region
      %55 = dma.done [#allocation3], 128
    $region21: #{net_forward.1} parent=1 // pred_fallthru
      _
    %56 = vsyncpa [#allocation3], 1
    %57 = vsyncpa [#allocation4], 1

</llo_original>
